<compile_context>
chip_gen: v7x
topology: tpu7x:2x2x1
jax: 0.10.0
libtpu: 0.0.40
codegen_flags: <defaults>
</compile_context>

<pallas_src>
import jax
import jax.numpy as jnp
from jax.experimental import pallas as pl
from jax.experimental.pallas import tpu as pltpu


def _round_up(x, m):
    return ((x + m - 1) // m) * m


def _pick_tile(n, target, granule):
    """Largest multiple of `granule` that divides n and is <= target.

    `n` is always a multiple of `granule` here (we pad first)."""
    best = granule
    t = granule
    limit = min(target, n)
    while t <= limit:
        if n % t == 0:
            best = t
        t += granule
    return best


def _support_kernel(x_ref, w_ref, s_ref):
    # support row tile = X_tile @ W  (f32 accumulate on MXU, stored bf16)
    s_ref[...] = jnp.dot(
        x_ref[...], w_ref[...], preferred_element_type=jnp.float32
    ).astype(s_ref.dtype)


def _aggregate_kernel_streamed(adj_ref, support_ref, o_ref, acc_ref):
    # output row tile = relu( sum_k  A[i, k-tile] @ support[k-tile, :] )
    # adj arrives as int8; cast to bf16 on the VPU before the MXU dot.
    @pl.when(pl.program_id(1) == 0)
    def _():
        acc_ref[...] = jnp.zeros_like(acc_ref)

    acc_ref[...] += jnp.dot(
        adj_ref[...].astype(jnp.bfloat16),
        support_ref[...],
        preferred_element_type=jnp.float32,
    )

    @pl.when(pl.program_id(1) == pl.num_programs(1) - 1)
    def _():
        o_ref[...] = jnp.maximum(acc_ref[...], 0.0).astype(o_ref.dtype)


def _aggregate_kernel_resident(adj_ref, support_ref, o_ref, acc_ref):
    # Same as above, but `support_ref` is the FULL (n_pad, f_out_pad) matrix
    # kept resident in VMEM (constant block index -> loaded once per call).
    k = pl.program_id(1)

    @pl.when(k == 0)
    def _():
        acc_ref[...] = jnp.zeros_like(acc_ref)

    tk = adj_ref.shape[1]
    k_start = pl.multiple_of(k * tk, 128)
    s_slab = support_ref[pl.ds(k_start, tk), :]
    acc_ref[...] += jnp.dot(
        adj_ref[...].astype(jnp.bfloat16),
        s_slab,
        preferred_element_type=jnp.float32,
    )

    @pl.when(k == pl.num_programs(1) - 1)
    def _():
        o_ref[...] = jnp.maximum(acc_ref[...], 0.0).astype(o_ref.dtype)


def gcn_layer(
    edge_index,
    features,
    weight,
    num_nodes,
    *,
    tile_n=1024,
    tile_k=4096,
    resident_support_bytes=16 << 20,
):
    """Pallas equivalent of GCNLayer.forward(edge_index, features, num_nodes)."""
    n, f_in = features.shape
    f_out = weight.shape[1]
    assert n == num_nodes

    # ---- lane-dense padding of the output feature dim (unmasked stores) ----
    f_out_pad = max(128, _round_up(f_out, 128))
    w = weight
    if f_out_pad != f_out:
        w = jnp.pad(weight, ((0, 0), (0, f_out_pad - f_out)))

    # ---- pad node count to a multiple of 128 (exact: zero rows/cols) ----
    n_pad = _round_up(n, 128)
    x = features
    if n_pad != n:
        x = jnp.pad(features, ((0, n_pad - n), (0, 0)))

    # Row tile: as large as requested, but keep >= 2 row tiles when possible
    # so v7x's two TensorCores both get work.  Adjacency K-tile: lane axis.
    tn = _pick_tile(n_pad, min(tile_n, max(128, n_pad // 2)), 128)
    tk = _pick_tile(n_pad, tile_k, 128)

    # ---- support = X @ W  (negligible FLOPs vs A @ support; row-parallel) ----
    support = pl.pallas_call(
        _support_kernel,
        out_shape=jax.ShapeDtypeStruct((n_pad, f_out_pad), jnp.bfloat16),
        grid_spec=pltpu.PrefetchScalarGridSpec(
            num_scalar_prefetch=0,
            grid=(n_pad // tn,),
            in_specs=[
                pl.BlockSpec((tn, f_in), lambda i: (i, 0)),
                pl.BlockSpec((f_in, f_out_pad), lambda i: (0, 0)),
            ],
            out_specs=pl.BlockSpec((tn, f_out_pad), lambda i: (i, 0)),
        ),
        compiler_params=pltpu.CompilerParams(
            dimension_semantics=("parallel",),
        ),
    )(x, w)

    # ---- dense adjacency from COO edges, built directly in int8 ----
    # Duplicates accumulate (matches torch.sparse.mm on an uncoalesced COO
    # tensor); edge multiplicity must stay <= 127 for int8.
    adj = jnp.zeros((n_pad, n_pad), dtype=jnp.int8)
    adj = adj.at[edge_index[0], edge_index[1]].add(
        jnp.ones(edge_index.shape[1], dtype=jnp.int8)
    )

    # ---- output = relu(A @ support): rows parallel, K-tiled reduction ----
    resident = n_pad * f_out_pad * 2 <= resident_support_bytes
    if resident:
        agg_kernel = _aggregate_kernel_resident
        support_spec = pl.BlockSpec((n_pad, f_out_pad), lambda i, k: (0, 0))
    else:
        agg_kernel = _aggregate_kernel_streamed
        support_spec = pl.BlockSpec((tk, f_out_pad), lambda i, k: (k, 0))

    out = pl.pallas_call(
        agg_kernel,
        out_shape=jax.ShapeDtypeStruct((n_pad, f_out_pad), jnp.float32),
        grid_spec=pltpu.PrefetchScalarGridSpec(
            num_scalar_prefetch=0,
            grid=(n_pad // tn, n_pad // tk),
            in_specs=[
                pl.BlockSpec((tn, tk), lambda i, k: (i, k)),  # int8 adj tile
                support_spec,
            ],
            out_specs=pl.BlockSpec((tn, f_out_pad), lambda i, k: (i, 0)),
            scratch_shapes=[pltpu.VMEM((tn, f_out_pad), jnp.float32)],
        ),
        compiler_params=pltpu.CompilerParams(
            dimension_semantics=("parallel", "arbitrary"),
            vmem_limit_bytes=48 << 20,  # fits v7x's 64 MiB; lifts v5e's 16 MiB default
        ),
    )(adj, support)

    return out[:n, :f_out]


if __name__ == "__main__":
    key = jax.random.PRNGKey(0)
    k_w, k_x, k_src, k_dst = jax.random.split(key, 4)

    num_nodes = 256
    in_features = 64
    out_features = 32
    num_edges = 512

    # Deterministic synthetic parameters / inputs (GCNLayer.__init__: randn(in, out))
    weight = jax.random.normal(k_w, (in_features, out_features), dtype=jnp.float32)
    features = jax.random.normal(k_x, (num_nodes, in_features), dtype=jnp.float32)
    edge_index = jnp.stack(
        [
            jax.random.randint(k_src, (num_edges,), 0, num_nodes),
            jax.random.randint(k_dst, (num_edges,), 0, num_nodes),
        ],
        axis=0,
    )  # shape (2, num_edges), int32

    out = gcn_layer(edge_index, features, weight, num_nodes)
    out = jax.block_until_ready(out)

    # Reference check (pure JAX, f32 end-to-end). The kernel stores support in
    # bf16 (adj int8 is exact), so tolerance is looser than pure-f32 but still
    # catches tiling/indexing bugs.
    adj_ref = (
        jnp.zeros((num_nodes, num_nodes), jnp.float32)
        .at[edge_index[0], edge_index[1]]
        .add(1.0)
    )
    ref = jnp.maximum(adj_ref @ (features @ weight), 0.0)
    assert out.shape == ref.shape
    assert jnp.allclose(out, ref, atol=0.5, rtol=5e-2), float(
        jnp.max(jnp.abs(out - ref))
    )

    print("KERNEL_OK")
</pallas_src>

<mosaic_0001>
module attributes {stable_mosaic.version = 11 : i64} {
  func.func @_support_kernel(%arg0: i32, %arg1: memref<128x64xf32, #tpu.memory_space<vmem>>, %arg2: memref<64x128xf32, #tpu.memory_space<vmem>>, %arg3: memref<128x128xbf16, #tpu.memory_space<vmem>>) attributes {dimension_semantics = [#tpu.dimension_semantics<parallel>], iteration_bounds = array<i64: 2>, scalar_prefetch = 0 : i64, scratch_operands = 0 : i64, tpu.core_type = #tpu.core_type<tc>, window_params = [{transform_indices = @transform_0, window_bounds = array<i64: 128, 64>}, {pipeline_mode = #tpu.pipeline_mode<synchronous>, transform_indices = @transform_1, window_bounds = array<i64: 64, 128>}, {transform_indices = @transform_2, window_bounds = array<i64: 128, 128>}]} {
    %c0 = arith.constant 0 : index
    %c0_0 = arith.constant 0 : index
    %0 = vector.load %arg1[%c0, %c0_0] : memref<128x64xf32, #tpu.memory_space<vmem>>, vector<128x64xf32>
    %c0_1 = arith.constant 0 : index
    %c0_2 = arith.constant 0 : index
    %1 = vector.load %arg2[%c0_1, %c0_2] : memref<64x128xf32, #tpu.memory_space<vmem>>, vector<64x128xf32>
    %cst = arith.constant dense<0.000000e+00> : vector<128x128xf32>
    %2 = tpu.matmul %0, %1, %cst {dimension_numbers = #tpu.dot_dimension_numbers<[1], [0], [0], [1], [0, 0, 1, 1], [], []>} : vector<128x64xf32>, vector<64x128xf32>, vector<128x128xf32> -> vector<128x128xf32>
    %3 = arith.truncf %2 : vector<128x128xf32> to vector<128x128xbf16>
    %c0_3 = arith.constant 0 : index
    %c0_4 = arith.constant 0 : index
    %4 = vector.load %arg3[%c0_3, %c0_4] : memref<128x128xbf16, #tpu.memory_space<vmem>>, vector<128x128xbf16>
    tpu.vector_store %arg3[%c0_3, %c0_4], %3 {strides = array<i32>} : memref<128x128xbf16, #tpu.memory_space<vmem>>, vector<128x128xbf16>,
    return
  }
  func.func @transform_0(%arg0: i32) -> (i32, i32) {
    %c0_i32 = arith.constant 0 : i32
    %c0_i32_0 = arith.constant 0 : i32
    return %arg0, %c0_i32 : i32, i32
  }
  func.func @transform_1(%arg0: i32) -> (i32, i32) {
    %c0_i32 = arith.constant 0 : i32
    %c0_i32_0 = arith.constant 0 : i32
    %c0_i32_1 = arith.constant 0 : i32
    return %c0_i32, %c0_i32_0 : i32, i32
  }
  func.func @transform_2(%arg0: i32) -> (i32, i32) {
    %c0_i32 = arith.constant 0 : i32
    %c0_i32_0 = arith.constant 0 : i32
    return %arg0, %c0_i32 : i32, i32
  }
}

</mosaic_0001>

<llo_original>
// kernel: tpu_custom_call.1
$region0: #{tpu_custom_call.1}
  #allocation0 [shape = 'u32[]', space=smem, size = 0x4, offset = 0x4, fixed_abs, tag = 'smem constant byte address 0x4 - core index']
  #allocation1 [shape = 'u32[144,128]{1,0:T(1,128)}', space=vmem, size = 0x12000, scoped, tag = 'internal scratch']
  %s0 = inlined_call_operand.vmem [shape: f32[256,64], index: 0, kind: input, shape index: {}]
  %s1 = inlined_call_operand.vmem [shape: f32[64,128], index: 1, kind: input, shape index: {}]
  %s2 = inlined_call_operand.hbm [shape: bf16[256,128], index: 2, kind: output, shape index: {}]
  %s3 = sld [smem:[#allocation0]]
  $region41: #{tpu_custom_call.1} parent=0
    _
  %s5 = ssub.s32 1, %s3
  %s6 = scalar_select 0, %s5, %s3
  $region1: #{tpu_custom_call.1} parent=0
    #allocation2 [shape = 'u8[65536]{0}', space=vmem, size = 0x10000, scoped, tag = 'output window, operand 0']
    #allocation3 [shape = 's32[2]{0}', space=sflag, size = 0x8, scoped, tag = 'scoped memory for tpu_custom_call.1']
    %7 = vsyncpa [#allocation3], 0
    %s8 = scalar_lea.sflag [#allocation3], 1
    %9 = vsyncpa %s8, 0
    loop: start=0, step=1, limit=4
    $region2: #{tpu_custom_call.1} parent=1 // loop_pre_header
      _
    $region3: #{tpu_custom_call.1} parent=1 // loop_header
      %s11 = sphi 0, %s15
      %p12 = scmp.ge.s32.totalorder %s11, 4
      %s21 = sphi 0, %s23
      %s24 = sphi 0, %s21
      %s25 = sphi 0, %s24
      %s41 = sphi 0, %s25
      %s45 = sphi 0, %s45
      %s47 = sphi 0, %s45
      %s48 = sphi 0, %s47
      %s62 = sphi 0, %s48
      %s68 = sphi 0, %s70
      %s71 = sphi 0, %s68
      %s72 = sphi 0, %s71
      %s88 = sphi 0, %s72
    $region4: #{tpu_custom_call.1} parent=1 // loop_header_branch
      %14 = sbr.rel (%p12) target = $region8
    $region5: #{tpu_custom_call.1} parent=1 // loop_body
      %s16 = ssub.s32 %s11, 1
      %s17 = ssub.s32 %s11, 2
      %s18 = sadd.s32 %s11, 1
      %s19 = ssub.s32 %s11, %s18
      %p20 = scmp.eq.s32.totalorder %s19, 0
      %s22 = sadd.s32 %s21, 1
      %s23 = scalar_select %p20, %s21, %s22
      %p26 = pneg %p20
      %p27 = scmp.eq.s32.totalorder %s11, 1
      %p28 = por %p26, %p27
      %p29 = scmp.ne.s32.totalorder %s21, %s24
      %p30 = scmp.eq.s32.totalorder %s11, 0
      %p31 = por %p29, %p30
      %p32 = scmp.ne.s32.totalorder %s21, %s24
      %p33 = scmp.eq.s32.totalorder %s16, 1
      %p34 = por %p32, %p33
      %p35 = scmp.ne.s32.totalorder %s24, %s25
      %p36 = scmp.eq.s32.totalorder %s16, 0
      %p37 = por %p35, %p36
      %p38 = scmp.ne.s32.totalorder %s24, %s25
      %p39 = scmp.eq.s32.totalorder %s17, 1
      %p40 = por %p38, %p39
      %p42 = scmp.ne.s32.totalorder %s25, %s41
      %p43 = scmp.eq.s32.totalorder %s17, 0
      %p44 = por %p42, %p43
      %s46 = sadd.s32 %s45, 1
      %p49 = scmp.eq.s32.totalorder %s11, 1
      %p50 = scmp.ne.s32.totalorder %s45, %s47
      %p51 = scmp.eq.s32.totalorder %s11, 0
      %p52 = por %p50, %p51
      %p53 = scmp.ne.s32.totalorder %s45, %s47
      %p54 = scmp.eq.s32.totalorder %s16, 1
      %p55 = por %p53, %p54
      %p56 = scmp.ne.s32.totalorder %s47, %s48
      %p57 = scmp.eq.s32.totalorder %s16, 0
      %p58 = por %p56, %p57
      %p59 = scmp.ne.s32.totalorder %s47, %s48
      %p60 = scmp.eq.s32.totalorder %s17, 1
      %p61 = por %p59, %p60
      %p63 = scmp.ne.s32.totalorder %s48, %s62
      %p64 = scmp.eq.s32.totalorder %s17, 0
      %p65 = por %p63, %p64
      %s66 = ssub.s32 %s11, %s18
      %p67 = scmp.eq.s32.totalorder %s66, 0
      %s69 = sadd.s32 %s68, 1
      %s70 = scalar_select %p67, %s68, %s69
      %p73 = pneg %p67
      %p74 = scmp.eq.s32.totalorder %s11, 1
      %p75 = por %p73, %p74
      %p76 = scmp.ne.s32.totalorder %s68, %s71
      %p77 = scmp.eq.s32.totalorder %s11, 0
      %p78 = por %p76, %p77
      %p79 = scmp.ne.s32.totalorder %s68, %s71
      %p80 = scmp.eq.s32.totalorder %s16, 1
      %p81 = por %p79, %p80
      %p82 = scmp.ne.s32.totalorder %s71, %s72
      %p83 = scmp.eq.s32.totalorder %s16, 0
      %p84 = por %p82, %p83
      %p85 = scmp.ne.s32.totalorder %s71, %s72
      %p86 = scmp.eq.s32.totalorder %s17, 1
      %p87 = por %p85, %p86
      %p89 = scmp.ne.s32.totalorder %s72, %s88
      %p90 = scmp.eq.s32.totalorder %s17, 0
      %p91 = por %p89, %p90
      %p92 = scmp.le.s32.totalorder 1, %s11
      %p93 = scmp.lt.s32.totalorder %s11, 3
      %p94 = pnand %p92, %p93
      %p95 = pneg %p94
      // Predicated region
      $region9: #{tpu_custom_call.1} parent=5 // pred_check
        _
      $region10: #{tpu_custom_call.1} parent=5 // pred_check_branch
        %97 = sbr.rel (%p94) target = $region12
      $region11: #{tpu_custom_call.1} parent=5 // pred_region
        %s98 = ssub.s32 %s11, 1
        // Predicated region
        $region13: #{tpu_custom_call.1} parent=11 // pred_check
          %p99 = pneg %p58
        $region14: #{tpu_custom_call.1} parent=11 // pred_check_branch
          %101 = sbr.rel (%p99) target = $region16
        $region15: #{tpu_custom_call.1} parent=11 // pred_region
          _
        $region16: #{tpu_custom_call.1} parent=11 // pred_fallthru
          _
      $region12: #{tpu_custom_call.1} parent=5 // pred_fallthru
        _
      %p102 = scmp.lt.s32.totalorder %s11, 2
      // Predicated region
      $region17: #{tpu_custom_call.1} parent=5 // pred_check
        %p103 = pneg %p102
      $region18: #{tpu_custom_call.1} parent=5 // pred_check_branch
        %105 = sbr.rel (%p103) target = $region20
      $region19: #{tpu_custom_call.1} parent=5 // pred_region
        // Predicated region
        $region21: #{tpu_custom_call.1} parent=19 // pred_check
          %p106 = pneg %p31
        $region22: #{tpu_custom_call.1} parent=19 // pred_check_branch
          %108 = sbr.rel (%p106) target = $region24
        $region23: #{tpu_custom_call.1} parent=19 // pred_region
          %s109 = smul.u32 16, %s11
          %p110 = scmp.lt.s32.totalorder %s109, 31
          %s111 = scalar_select %p110, %s109, 31
          %s112 = smul.addr %s111, 8
          %s113 = scalar_lea.vmem %s0, %s112
          %s114 = smul.u32 16, %s11
        $region24: #{tpu_custom_call.1} parent=19 // pred_fallthru
          _
      $region20: #{tpu_custom_call.1} parent=5 // pred_fallthru
        _
      %p115 = scmp.le.s32.totalorder 1, %s11
      %p116 = scmp.lt.s32.totalorder %s11, 3
      %p117 = pnand %p115, %p116
      %p118 = pneg %p117
      // Predicated region
      $region25: #{tpu_custom_call.1} parent=5 // pred_check
        _
      $region26: #{tpu_custom_call.1} parent=5 // pred_check_branch
        %120 = sbr.rel (%p117) target = $region28
      $region27: #{tpu_custom_call.1} parent=5 // pred_region
        %s121 = ssub.s32 %s11, 1
        %s122 = smul.u32 16, %s16
        %p123 = scmp.lt.s32.totalorder %s122, 31
        %s124 = scalar_select %p123, %s122, 31
        %s125 = smul.addr %s124, 8
        %s126 = scalar_lea.vmem %s0, %s125
        %p127 = pneg %p37
        %p128 = pneg %p34
        %p129 = pneg %p58
        %p130 = pneg %p55
        %p131 = pneg %p84
        %p132 = pneg %p81
        %s133 = sand.u32 %s71, 1
        %s134 = scalar_lea.sflag [#allocation3], %s133
        %s135 = sand.u32 %s71, 1
        %s136 = smul.addr %s135, 64
        %s137 = scalar_lea.vmem [#allocation2], %s136
        %s138 = smul.u32 16, %s16
        %p139 = scmp.lt.s32.totalorder %s138, 31
        %s140 = scalar_select %p139, %s138, 31
        %s141 = smul.addr %s140, 8
        %s142 = scalar_lea.vmem %s0, %s141
        %s143 = smul.u32 16, %s16
        %s144 = smul.u32 16, %s16
        %v145 = vld [vmem:[%s142] sm:$0xff]
        %v146 = vld [vmem:[%s142 + $0x8] sm:$0xff]
        %v147 = vld [vmem:[%s142 + $0x10] sm:$0xff]
        %v148 = vld [vmem:[%s142 + $0x18] sm:$0xff]
        %v149 = vld [vmem:[%s142 + $0x20] sm:$0xff]
        %v150 = vld [vmem:[%s142 + $0x28] sm:$0xff]
        %v151 = vld [vmem:[%s142 + $0x30] sm:$0xff]
        %v152 = vld [vmem:[%s142 + $0x38] sm:$0xff]
        %v153 = vld [vmem:[%s142 + $0x40] sm:$0xff]
        %v154 = vld [vmem:[%s142 + $0x48] sm:$0xff]
        %v155 = vld [vmem:[%s142 + $0x50] sm:$0xff]
        %v156 = vld [vmem:[%s142 + $0x58] sm:$0xff]
        %v157 = vld [vmem:[%s142 + $0x60] sm:$0xff]
        %v158 = vld [vmem:[%s142 + $0x68] sm:$0xff]
        %v159 = vld [vmem:[%s142 + $0x70] sm:$0xff]
        %v160 = vld [vmem:[%s142 + $0x78] sm:$0xff]
        %v161 = vld [vmem:[%s1] sm:$0xff]
        %v162 = vld [vmem:[%s1 + $0x8] sm:$0xff]
        %v163 = vld [vmem:[%s1 + $0x10] sm:$0xff]
        %v164 = vld [vmem:[%s1 + $0x18] sm:$0xff]
        %v165 = vld [vmem:[%s1 + $0x20] sm:$0xff]
        %v166 = vld [vmem:[%s1 + $0x28] sm:$0xff]
        %v167 = vld [vmem:[%s1 + $0x30] sm:$0xff]
        %v168 = vld [vmem:[%s1 + $0x38] sm:$0xff]
        %vm169 = vcmask 523264
        %v171 = vsel %vm169, %v145, 0
        %v174 = vsel %vm169, %v146, 0
        %v177 = vsel %vm169, %v147, 0
        %v180 = vsel %vm169, %v148, 0
        %v183 = vsel %vm169, %v149, 0
        %v186 = vsel %vm169, %v150, 0
        %v189 = vsel %vm169, %v151, 0
        %v192 = vsel %vm169, %v152, 0
        %v195 = vsel %vm169, %v153, 0
        %v198 = vsel %vm169, %v154, 0
        %v201 = vsel %vm169, %v155, 0
        %v204 = vsel %vm169, %v156, 0
        %v207 = vsel %vm169, %v157, 0
        %v210 = vsel %vm169, %v158, 0
        %v213 = vsel %vm169, %v159, 0
        %v216 = vsel %vm169, %v160, 0
        %218 = vmatprep.subr.mxu0 0.0
        %219 = vmatpush1.msra.mxu0 %v161
        %220 = vmatprep.subr.mxu0 0.0
        %221 = vmatpush1.msra.mxu0 %v162
        %222 = vmatprep.subr.mxu0 0.0
        %223 = vmatpush1.msra.mxu0 %v163
        %224 = vmatprep.subr.mxu0 0.0
        %225 = vmatpush1.msra.mxu0 %v164
        %226 = vmatprep.subr.mxu0 0.0
        %227 = vmatpush1.msra.mxu0 %v165
        %228 = vmatprep.subr.mxu0 0.0
        %229 = vmatpush1.msra.mxu0 %v166
        %230 = vmatprep.subr.mxu0 0.0
        %231 = vmatpush1.msra.mxu0 %v167
        %232 = vmatprep.subr.mxu0 0.0
        %233 = vmatpush1.msra.mxu0 %v168
        %234 = vmatprep.subr.mxu0 0.0
        %235 = vmatpush1.msra.mxu0 0.0
        %236 = vmatprep.subr.mxu0 0.0
        %237 = vmatpush1.msra.mxu0 0.0
        %238 = vmatprep.subr.mxu0 0.0
        %239 = vmatpush1.msra.mxu0 0.0
        %240 = vmatprep.subr.mxu0 0.0
        %241 = vmatpush1.msra.mxu0 0.0
        %242 = vmatprep.subr.mxu0 0.0
        %243 = vmatpush1.msra.mxu0 0.0
        %244 = vmatprep.subr.mxu0 0.0
        %245 = vmatpush1.msra.mxu0 0.0
        %246 = vmatprep.subr.mxu0 0.0
        %247 = vmatpush1.msra.mxu0 0.0
        %248 = vmatprep.subr.mxu0 0.0
        %249 = vmatpush1.msra.mxu0 0.0
        %250 = vmatprep.subr.mxu0 0.0
        %251 = vmatpush1.msra.mxu0 0.0
        %252 = vmatprep.subr.mxu0 0.0
        %253 = vmatpush1.msra.mxu0 0.0
        %254 = vmatprep.subr.mxu0 0.0
        %255 = vmatpush1.msra.mxu0 0.0
        %256 = vmatprep.subr.mxu0 0.0
        %257 = vmatpush1.msra.mxu0 0.0
        %258 = vmatprep.subr.mxu0 0.0
        %259 = vmatpush1.msra.mxu0 0.0
        %260 = vmatprep.subr.mxu0 0.0
        %261 = vmatpush1.msra.mxu0 0.0
        %262 = vmatprep.subr.mxu0 0.0
        %263 = vmatpush1.msra.mxu0 0.0
        %264 = vmatprep.subr.mxu0 0.0
        %265 = vmatpush1.msra.mxu0 0.0
        %266 = vmatprep.subr.mxu0 0.0
        %267 = vmatpush1.msra.mxu0 0.0
        %268 = vmatprep.subr.mxu0 0.0
        %269 = vmatpush1.msra.mxu0 0.0
        %270 = vmatprep.subr.mxu0 0.0
        %271 = vmatpush1.msra.mxu0 0.0
        %272 = vmatprep.subr.mxu0 0.0
        %273 = vmatpush1.msra.mxu0 0.0
        %274 = vmatprep.subr.mxu0 0.0
        %275 = vmatpush1.msra.mxu0 0.0
        %276 = vmatprep.subr.mxu0 0.0
        %277 = vmatpush1.msra.mxu0 0.0
        %278 = vmatprep.subr.mxu0 0.0
        %279 = vmatpush1.msra.mxu0 0.0
        %280 = vmatprep.subr.mxu0 0.0
        %281 = vmatpush1.msra.mxu0 0.0
        %282 = vmatprep.mubr.f32.mxu0 0.0
        %283 = vmatmul.mubr.f32.gmra.mrb[0].mxu0 %v171
        %v284 = vpop.f32.mrb[0].mxu0
        %v285 = vadd.f32 0.0, %v284
        %v286 = vpop.f32.mrb[0].mxu0
        %287 = vmatprep.mubr.f32.mxu0 0.0
        %288 = vmatmul.mubr.f32.gmra.mrb[0].mxu0 %v174
        %v289 = vpop.f32.mrb[0].mxu0
        %v290 = vadd.f32 0.0, %v289
        %v291 = vpop.f32.mrb[0].mxu0
        %292 = vmatprep.mubr.f32.mxu0 0.0
        %293 = vmatmul.mubr.f32.gmra.mrb[0].mxu0 %v177
        %v294 = vpop.f32.mrb[0].mxu0
        %v295 = vadd.f32 0.0, %v294
        %v296 = vpop.f32.mrb[0].mxu0
        %297 = vmatprep.mubr.f32.mxu0 0.0
        %298 = vmatmul.mubr.f32.gmra.mrb[0].mxu0 %v180
        %v299 = vpop.f32.mrb[0].mxu0
        %v300 = vadd.f32 0.0, %v299
        %v301 = vpop.f32.mrb[0].mxu0
        %302 = vmatprep.mubr.f32.mxu0 0.0
        %303 = vmatmul.mubr.f32.gmra.mrb[0].mxu0 %v183
        %v304 = vpop.f32.mrb[0].mxu0
        %v305 = vadd.f32 0.0, %v304
        %v306 = vpop.f32.mrb[0].mxu0
        %307 = vmatprep.mubr.f32.mxu0 0.0
        %308 = vmatmul.mubr.f32.gmra.mrb[0].mxu0 %v186
        %v309 = vpop.f32.mrb[0].mxu0
        %v310 = vadd.f32 0.0, %v309
        %v311 = vpop.f32.mrb[0].mxu0
        %312 = vmatprep.mubr.f32.mxu0 0.0
        %313 = vmatmul.mubr.f32.gmra.mrb[0].mxu0 %v189
        %v314 = vpop.f32.mrb[0].mxu0
        %v315 = vadd.f32 0.0, %v314
        %v316 = vpop.f32.mrb[0].mxu0
        %317 = vmatprep.mubr.f32.mxu0 0.0
        %318 = vmatmul.mubr.f32.gmra.mrb[0].mxu0 %v192
        %v319 = vpop.f32.mrb[0].mxu0
        %v320 = vadd.f32 0.0, %v319
        %v321 = vpop.f32.mrb[0].mxu0
        %322 = vmatprep.mubr.f32.mxu0 0.0
        %323 = vmatmul.mubr.f32.gmra.mrb[0].mxu0 %v195
        %v324 = vpop.f32.mrb[0].mxu0
        %v325 = vadd.f32 0.0, %v324
        %v326 = vpop.f32.mrb[0].mxu0
        %327 = vmatprep.mubr.f32.mxu0 0.0
        %328 = vmatmul.mubr.f32.gmra.mrb[0].mxu0 %v198
        %v329 = vpop.f32.mrb[0].mxu0
        %v330 = vadd.f32 0.0, %v329
        %v331 = vpop.f32.mrb[0].mxu0
        %332 = vmatprep.mubr.f32.mxu0 0.0
        %333 = vmatmul.mubr.f32.gmra.mrb[0].mxu0 %v201
        %v334 = vpop.f32.mrb[0].mxu0
        %v335 = vadd.f32 0.0, %v334
        %v336 = vpop.f32.mrb[0].mxu0
        %337 = vmatprep.mubr.f32.mxu0 0.0
        %338 = vmatmul.mubr.f32.gmra.mrb[0].mxu0 %v204
        %v339 = vpop.f32.mrb[0].mxu0
        %v340 = vadd.f32 0.0, %v339
        %v341 = vpop.f32.mrb[0].mxu0
        %342 = vmatprep.mubr.f32.mxu0 0.0
        %343 = vmatmul.mubr.f32.gmra.mrb[0].mxu0 %v207
        %v344 = vpop.f32.mrb[0].mxu0
        %v345 = vadd.f32 0.0, %v344
        %v346 = vpop.f32.mrb[0].mxu0
        %347 = vmatprep.mubr.f32.mxu0 0.0
        %348 = vmatmul.mubr.f32.gmra.mrb[0].mxu0 %v210
        %v349 = vpop.f32.mrb[0].mxu0
        %v350 = vadd.f32 0.0, %v349
        %v351 = vpop.f32.mrb[0].mxu0
        %352 = vmatprep.mubr.f32.mxu0 0.0
        %353 = vmatmul.mubr.f32.gmra.mrb[0].mxu0 %v213
        %v354 = vpop.f32.mrb[0].mxu0
        %v355 = vadd.f32 0.0, %v354
        %v356 = vpop.f32.mrb[0].mxu0
        %357 = vmatprep.mubr.f32.mxu0 0.0
        %358 = vmatmul.mubr.f32.gmra.mrb[0].mxu0 %v216
        %v359 = vpop.f32.mrb[0].mxu0
        %v360 = vadd.f32 0.0, %v359
        %v361 = vpop.f32.mrb[0].mxu0
        %362 = vdwg.mxu0
        %v363 = vpack.c.bf16 %v290, %v285
        %v364 = vpack.c.bf16 %v300, %v295
        %v365 = vpack.c.bf16 %v310, %v305
        %v366 = vpack.c.bf16 %v320, %v315
        %v367 = vpack.c.bf16 %v330, %v325
        %v368 = vpack.c.bf16 %v340, %v335
        %v369 = vpack.c.bf16 %v350, %v345
        %v370 = vpack.c.bf16 %v360, %v355
        %v379 = vunpack.c.l.b16 %v363
        %v380 = vunpack.c.h.b16 %v363
        %v381 = vunpack.c.l.b16 %v364
        %v382 = vunpack.c.h.b16 %v364
        %v383 = vunpack.c.l.b16 %v365
        %v384 = vunpack.c.h.b16 %v365
        %v385 = vunpack.c.l.b16 %v366
        %v386 = vunpack.c.h.b16 %v366
        %v387 = vunpack.c.l.b16 %v367
        %v388 = vunpack.c.h.b16 %v367
        %v389 = vunpack.c.l.b16 %v368
        %v390 = vunpack.c.h.b16 %v368
        %v391 = vunpack.c.l.b16 %v369
        %v392 = vunpack.c.h.b16 %v369
        %v393 = vunpack.c.l.b16 %v370
        %v394 = vunpack.c.h.b16 %v370
        %v395 = vpack.c.b16 %v379, %v379
        %v396 = vpack.c.b16 %v380, %v380
        %v397 = vpack.c.b16 %v381, %v381
        %v398 = vpack.c.b16 %v382, %v382
        %v399 = vpack.c.b16 %v383, %v383
        %v400 = vpack.c.b16 %v384, %v384
        %v401 = vpack.c.b16 %v385, %v385
        %v402 = vpack.c.b16 %v386, %v386
        %v403 = vpack.c.b16 %v387, %v387
        %v404 = vpack.c.b16 %v388, %v388
        %v405 = vpack.c.b16 %v389, %v389
        %v406 = vpack.c.b16 %v390, %v390
        %v407 = vpack.c.b16 %v391, %v391
        %v408 = vpack.c.b16 %v392, %v392
        %v409 = vpack.c.b16 %v393, %v393
        %v410 = vpack.c.b16 %v394, %v394
        %427 = vst [vmem:[%s137] sm:$0xf] %v395
        %428 = vst [vmem:[%s137 + $0x4] sm:$0xf] %v396
        %429 = vst [vmem:[%s137 + $0x8] sm:$0xf] %v397
        %430 = vst [vmem:[%s137 + $0xc] sm:$0xf] %v398
        %431 = vst [vmem:[%s137 + $0x10] sm:$0xf] %v399
        %432 = vst [vmem:[%s137 + $0x14] sm:$0xf] %v400
        %433 = vst [vmem:[%s137 + $0x18] sm:$0xf] %v401
        %434 = vst [vmem:[%s137 + $0x1c] sm:$0xf] %v402
        %435 = vst [vmem:[%s137 + $0x20] sm:$0xf] %v403
        %436 = vst [vmem:[%s137 + $0x24] sm:$0xf] %v404
        %437 = vst [vmem:[%s137 + $0x28] sm:$0xf] %v405
        %438 = vst [vmem:[%s137 + $0x2c] sm:$0xf] %v406
        %439 = vst [vmem:[%s137 + $0x30] sm:$0xf] %v407
        %440 = vst [vmem:[%s137 + $0x34] sm:$0xf] %v408
        %441 = vst [vmem:[%s137 + $0x38] sm:$0xf] %v409
        %442 = vst [vmem:[%s137 + $0x3c] sm:$0xf] %v410
        %s443 = sand.u32 %s71, 1
        %s444 = scalar_lea.sflag [#allocation3], %s443
        %s445 = sand.u32 %s71, 1
        %s446 = smul.addr %s445, 64
        %s447 = scalar_lea.vmem [#allocation2], %s446
        // Predicated region
        $region29: #{tpu_custom_call.1} parent=27 // pred_check
          %p448 = pneg %p81
        $region30: #{tpu_custom_call.1} parent=27 // pred_check_branch
          %450 = sbr.rel (%p448) target = $region32
        $region31: #{tpu_custom_call.1} parent=27 // pred_region
          %s451 = smul.u32 16, %s16
          %s453 = ssub.s32 1024, 1024
          %454 = vsyncadd %s444, %s453
          %s455 = smul.addr %s451, 64
          %s456 = scalar_lea.hbm %s2, %s455
          %s457 = sshll.u32 %s447, 4
          %s458 = int_to_ptr.vmem [resolvable:$true] %s457
          %463 = dma.vmem_to_hbm [thread:$0]  %s458, 1024, %s456, %s444, 64, 64, 4
        $region32: #{tpu_custom_call.1} parent=27 // pred_fallthru
          _
      $region28: #{tpu_custom_call.1} parent=5 // pred_fallthru
        _
      %p464 = scmp.le.s32.totalorder 2, %s11
      // Predicated region
      $region33: #{tpu_custom_call.1} parent=5 // pred_check
        %p465 = pneg %p464
      $region34: #{tpu_custom_call.1} parent=5 // pred_check_branch
        %467 = sbr.rel (%p465) target = $region36
      $region35: #{tpu_custom_call.1} parent=5 // pred_region
        %s468 = ssub.s32 %s11, 2
        // Predicated region
        $region37: #{tpu_custom_call.1} parent=35 // pred_check
          %p469 = pneg %p87
        $region38: #{tpu_custom_call.1} parent=35 // pred_check_branch
          %471 = sbr.rel (%p469) target = $region40
        $region39: #{tpu_custom_call.1} parent=35 // pred_region
          %s472 = sand.u32 %s72, 1
          %s473 = scalar_lea.sflag [#allocation3], %s472
          %s474 = sand.u32 %s72, 1
          %s475 = smul.addr %s474, 64
          %s476 = scalar_lea.vmem [#allocation2], %s475
          %477 = dma.done %s473, 1024
        $region40: #{tpu_custom_call.1} parent=35 // pred_fallthru
          _
      $region36: #{tpu_custom_call.1} parent=5 // pred_fallthru
        _
    $region6: #{tpu_custom_call.1} parent=1 // loop_footer
      %s15 = sadd.s32 1, %s11
    $region7: #{tpu_custom_call.1} parent=1 // loop_footer_branch
      %10 = sbr.rel target = $region3
    $region8: #{tpu_custom_call.1} parent=1 // loop_exit
      _
    %478 = vsyncpa [#allocation3], 1
    %s479 = scalar_lea.sflag [#allocation3], 1
    %480 = vsyncpa %s479, 1

</llo_original>
